<compile_context>
chip_gen: v7x
topology: tpu7x:2x2x1
jax: 0.10.0
libtpu: 0.0.40
codegen_flags: <defaults>
</compile_context>

<pallas_src>
import functools

import jax
import jax.numpy as jnp
from jax.experimental import pallas as pl
from jax.experimental.pallas import tpu as pltpu


# ----------------------------------------------------------------------------
# Kernel 1: row-tiled Linear (+bias) with streamed per-tile BN partial stats.
# ----------------------------------------------------------------------------
def linear_stats_kernel(x_ref, w_ref, b_ref, y_ref, stats_ref):
    # x: (TR, Cin), w: (Cin, Cout), b: (1, Cout)
    # y: (TR, Cout), stats: (2, Cout)  [row 0 = sum, row 1 = sum of squares]
    y = jnp.dot(x_ref[...], w_ref[...], preferred_element_type=jnp.float32)
    y = y + b_ref[...]
    stats_ref[0:1, :] = jnp.sum(y, axis=0, keepdims=True)
    stats_ref[1:2, :] = jnp.sum(y * y, axis=0, keepdims=True)
    y_ref[...] = y.astype(y_ref.dtype)


# ----------------------------------------------------------------------------
# Kernel 2: per-batch BN-normalize + ReLU + KNN gather (one-hot MXU) + max(K).
# ----------------------------------------------------------------------------
def gather_norm_max_kernel(kidx_ref, y_ref, scale_ref, shift_ref, out_ref,
                           *, n_neighbors):
    # kidx: (M, K) int32, y: (N, D) f32, scale/shift: (1, D), out: (M, D)
    n = y_ref.shape[0]
    m = out_ref.shape[0]
    d = out_ref.shape[1]

    # Fused BatchNorm (precomputed scale/shift) + ReLU on the whole (N, D) tile.
    f = jnp.maximum(y_ref[...] * scale_ref[...] + shift_ref[...], 0.0)

    col = jax.lax.broadcasted_iota(jnp.int32, (m, n), 1)          # (M, N)
    acc = jnp.full((m, d), -jnp.inf, dtype=jnp.float32)
    for k in range(n_neighbors):                                  # static unroll
        idx = kidx_ref[:, k:k + 1]                                # (M, 1)
        onehot = (idx == col).astype(jnp.float32)                 # (M, N)
        # MXU gather of all M neighbor rows at once (exact: 1.0 * value).
        g = jnp.dot(onehot, f, preferred_element_type=jnp.float32)  # (M, D)
        acc = jnp.maximum(acc, g)
    out_ref[...] = acc.astype(out_ref.dtype)


def _pick_tile_r(r):
    """Largest power-of-two row tile (<=1024, >=8) that divides r exactly."""
    for t in (1024, 512, 256, 128, 64, 32, 16, 8):
        if r % t == 0:
            return t
    return r  # awkward size: single full-row block (always a legal BlockSpec)


# ----------------------------------------------------------------------------
# Wrapper
# ----------------------------------------------------------------------------
def transition_down(pos, feat, fps_idx, k_idx, weight_t, bias, gamma, beta,
                    eps=1e-5):
    B, N, _ = pos.shape
    d_in = feat.shape[-1]
    d_out = weight_t.shape[1]
    M = k_idx.shape[1]
    K = k_idx.shape[2]
    R = B * N

    tile_r = _pick_tile_r(R)
    n_tiles = R // tile_r

    x2d = feat.reshape(R, d_in).astype(jnp.float32)
    w = weight_t.astype(jnp.float32)
    b2 = bias.reshape(1, d_out).astype(jnp.float32)

    # ---- Kernel 1: row-tiled Linear + streamed BN partial statistics ----
    y2d, stats = pl.pallas_call(
        linear_stats_kernel,
        grid=(n_tiles,),
        in_specs=[
            pl.BlockSpec((tile_r, d_in), lambda i: (i, 0)),
            pl.BlockSpec((d_in, d_out), lambda i: (0, 0)),
            pl.BlockSpec((1, d_out), lambda i: (0, 0)),
        ],
        out_specs=[
            pl.BlockSpec((tile_r, d_out), lambda i: (i, 0)),
            pl.BlockSpec((None, 2, d_out), lambda i: (i, 0, 0)),
        ],
        out_shape=(
            jax.ShapeDtypeStruct((R, d_out), jnp.float32),
            jax.ShapeDtypeStruct((n_tiles, 2, d_out), jnp.float32),
        ),
        compiler_params=pltpu.CompilerParams(
            dimension_semantics=("parallel",)),
    )(x2d, w, b2)

    # ---- finalize global BN (training) statistics -> per-channel affine ----
    sum_c = stats[:, 0, :].sum(axis=0)                     # (Cout,)
    sq_c = stats[:, 1, :].sum(axis=0)                      # (Cout,)
    mean = sum_c / R
    var = jnp.maximum(sq_c / R - mean * mean, 0.0)         # biased variance
    inv_std = jax.lax.rsqrt(var + eps)
    scale_vec = gamma.astype(jnp.float32) * inv_std
    shift_vec = beta.astype(jnp.float32) - mean * scale_vec
    scale2 = scale_vec.reshape(1, d_out)
    shift2 = shift_vec.reshape(1, d_out)

    y3d = y2d.reshape(B, N, d_out)                         # contiguous: free

    # ---- Kernel 2: fused normalize+ReLU + KNN gather + max over K ----
    feat_ds = pl.pallas_call(
        functools.partial(gather_norm_max_kernel, n_neighbors=K),
        grid=(B,),
        in_specs=[
            pl.BlockSpec((None, M, K), lambda b: (b, 0, 0)),
            pl.BlockSpec((None, N, d_out), lambda b: (b, 0, 0)),
            pl.BlockSpec((1, d_out), lambda b: (0, 0)),
            pl.BlockSpec((1, d_out), lambda b: (0, 0)),
        ],
        out_specs=pl.BlockSpec((None, M, d_out), lambda b: (b, 0, 0)),
        out_shape=jax.ShapeDtypeStruct((B, M, d_out), jnp.float32),
        compiler_params=pltpu.CompilerParams(
            dimension_semantics=("parallel",)),
    )(k_idx.astype(jnp.int32), y3d, scale2, shift2)

    # ---- downsampled positions: tiny (B, M, 3) gather, done in XLA ----
    pos_ds = jnp.take_along_axis(
        pos.astype(jnp.float32), fps_idx[:, :, None].astype(jnp.int32), axis=1)

    return pos_ds, feat_ds


# ----------------------------------------------------------------------------
# Pure-JAX reference (for correctness check only)
# ----------------------------------------------------------------------------
def transition_down_ref(pos, feat, fps_idx, k_idx, weight_t, bias, gamma, beta):
    B, N, _ = pos.shape
    d_out = weight_t.shape[1]
    y = feat.reshape(B * N, -1) @ weight_t + bias
    mu = y.mean(axis=0, keepdims=True)
    var = ((y - mu) ** 2).mean(axis=0, keepdims=True)
    z = jnp.maximum(gamma * (y - mu) / jnp.sqrt(var + 1e-5) + beta, 0.0)
    z = z.reshape(B, N, d_out)
    bidx = jnp.arange(B)[:, None]
    pos_ds = pos[bidx, fps_idx]                         # (B, M, 3)
    feat_knn = z[jnp.arange(B)[:, None, None], k_idx]   # (B, M, K, D)
    feat_ds = feat_knn.max(axis=2)                      # (B, M, D)
    return pos_ds, feat_ds


if __name__ == "__main__":
    B, N, d_in, d_out = 2, 16, 4, 32
    downsample_ratio = 2
    M = N // downsample_ratio   # 8 downsampled points
    K = 4                       # neighbors per downsampled point

    key = jax.random.PRNGKey(0)
    k1, k2, k3, k4, k5, k6 = jax.random.split(key, 6)

    pos = jax.random.normal(k1, (B, N, 3), dtype=jnp.float32)
    feat = jax.random.normal(k2, (B, N, d_in), dtype=jnp.float32)
    fps_idx = jax.random.randint(k3, (B, M), 0, N, dtype=jnp.int32)
    k_idx = jax.random.randint(k4, (B, M, K), 0, N, dtype=jnp.int32)

    # Deterministic parameter init (nn.Linear-like scale); BN gamma=1, beta=0.
    bound = 1.0 / (d_in ** 0.5)
    weight_t = jax.random.uniform(k5, (d_in, d_out), jnp.float32, -bound, bound)
    bias = jax.random.uniform(k6, (d_out,), jnp.float32, -bound, bound)
    gamma = jnp.ones((d_out,), jnp.float32)
    beta = jnp.zeros((d_out,), jnp.float32)

    pos_ds, feat_ds = transition_down(pos, feat, fps_idx, k_idx,
                                      weight_t, bias, gamma, beta)
    jax.block_until_ready((pos_ds, feat_ds))

    pos_ref, feat_ref = transition_down_ref(pos, feat, fps_idx, k_idx,
                                            weight_t, bias, gamma, beta)
    assert pos_ds.shape == (B, M, 3) and feat_ds.shape == (B, M, d_out)
    assert jnp.allclose(pos_ds, pos_ref, atol=1e-5, rtol=1e-5)
    assert jnp.allclose(feat_ds, feat_ref, atol=1e-4, rtol=1e-4)

    print("KERNEL_OK")
</pallas_src>

<mosaic_0001>
module attributes {stable_mosaic.version = 11 : i64} {
  func.func @linear_stats_kernel(%arg0: i32, %arg1: memref<32x4xf32, #tpu.memory_space<vmem>>, %arg2: memref<4x32xf32, #tpu.memory_space<vmem>>, %arg3: memref<1x32xf32, #tpu.memory_space<vmem>>, %arg4: memref<32x32xf32, #tpu.memory_space<vmem>>, %arg5: memref<1x2x32xf32, #tpu.memory_space<vmem>>) attributes {dimension_semantics = [#tpu.dimension_semantics<parallel>], iteration_bounds = array<i64: 1>, scalar_prefetch = 0 : i64, scratch_operands = 0 : i64, tpu.core_type = #tpu.core_type<tc>, window_params = [{transform_indices = @transform_0, window_bounds = array<i64: 32, 4>}, {pipeline_mode = #tpu.pipeline_mode<synchronous>, transform_indices = @transform_1, window_bounds = array<i64: 4, 32>}, {pipeline_mode = #tpu.pipeline_mode<synchronous>, transform_indices = @transform_2, window_bounds = array<i64: 1, 32>}, {transform_indices = @transform_3, window_bounds = array<i64: 32, 32>}, {transform_indices = @transform_4, window_bounds = array<i64: 1, 2, 32>}]} {
    %c0 = arith.constant 0 : index
    %c0_0 = arith.constant 0 : index
    %0 = vector.load %arg1[%c0, %c0_0] : memref<32x4xf32, #tpu.memory_space<vmem>>, vector<32x4xf32>
    %c0_1 = arith.constant 0 : index
    %c0_2 = arith.constant 0 : index
    %1 = vector.load %arg2[%c0_1, %c0_2] : memref<4x32xf32, #tpu.memory_space<vmem>>, vector<4x32xf32>
    %cst = arith.constant dense<0.000000e+00> : vector<32x32xf32>
    %2 = tpu.matmul %0, %1, %cst {dimension_numbers = #tpu.dot_dimension_numbers<[1], [0], [0], [1], [0, 0, 1, 1], [], []>} : vector<32x4xf32>, vector<4x32xf32>, vector<32x32xf32> -> vector<32x32xf32>
    %c0_3 = arith.constant 0 : index
    %c0_4 = arith.constant 0 : index
    %3 = vector.load %arg3[%c0_3, %c0_4] : memref<1x32xf32, #tpu.memory_space<vmem>>, vector<1x32xf32>
    %4 = vector.broadcast %3 : vector<1x32xf32> to vector<32x32xf32>
    %5 = arith.addf %2, %4 : vector<32x32xf32>
    %cst_5 = arith.constant dense<0.000000e+00> : vector<32xf32>
    %6 = vector.multi_reduction <add>, %5, %cst_5 [0] : vector<32x32xf32> to vector<32xf32>
    %7 = vector.shape_cast %6 : vector<32xf32> to vector<1x32xf32>
    %c0_6 = arith.constant 0 : index
    %c0_7 = arith.constant 0 : index
    %c0_8 = arith.constant 0 : index
    %8 = vector.load %arg5[%c0_6, %c0_7, %c0_8] : memref<1x2x32xf32, #tpu.memory_space<vmem>>, vector<1x1x32xf32>
    %9 = vector.shape_cast %8 : vector<1x1x32xf32> to vector<1x32xf32>
    %10 = vector.shape_cast %7 : vector<1x32xf32> to vector<1x1x32xf32>
    tpu.vector_store %arg5[%c0_6, %c0_7, %c0_8], %10 {strides = array<i32>} : memref<1x2x32xf32, #tpu.memory_space<vmem>>, vector<1x1x32xf32>,
    %11 = arith.mulf %5, %5 : vector<32x32xf32>
    %cst_9 = arith.constant dense<0.000000e+00> : vector<32xf32>
    %12 = vector.multi_reduction <add>, %11, %cst_9 [0] : vector<32x32xf32> to vector<32xf32>
    %13 = vector.shape_cast %12 : vector<32xf32> to vector<1x32xf32>
    %c0_10 = arith.constant 0 : index
    %c1 = arith.constant 1 : index
    %c0_11 = arith.constant 0 : index
    %14 = vector.load %arg5[%c0_10, %c1, %c0_11] : memref<1x2x32xf32, #tpu.memory_space<vmem>>, vector<1x1x32xf32>
    %15 = vector.shape_cast %14 : vector<1x1x32xf32> to vector<1x32xf32>
    %16 = vector.shape_cast %13 : vector<1x32xf32> to vector<1x1x32xf32>
    tpu.vector_store %arg5[%c0_10, %c1, %c0_11], %16 {strides = array<i32>} : memref<1x2x32xf32, #tpu.memory_space<vmem>>, vector<1x1x32xf32>,
    %c0_12 = arith.constant 0 : index
    %c0_13 = arith.constant 0 : index
    %17 = vector.load %arg4[%c0_12, %c0_13] : memref<32x32xf32, #tpu.memory_space<vmem>>, vector<32x32xf32>
    tpu.vector_store %arg4[%c0_12, %c0_13], %5 {strides = array<i32>} : memref<32x32xf32, #tpu.memory_space<vmem>>, vector<32x32xf32>,
    return
  }
  func.func @transform_0(%arg0: i32) -> (i32, i32) {
    %c0_i32 = arith.constant 0 : i32
    %c0_i32_0 = arith.constant 0 : i32
    return %arg0, %c0_i32 : i32, i32
  }
  func.func @transform_1(%arg0: i32) -> (i32, i32) {
    %c0_i32 = arith.constant 0 : i32
    %c0_i32_0 = arith.constant 0 : i32
    %c0_i32_1 = arith.constant 0 : i32
    return %c0_i32, %c0_i32_0 : i32, i32
  }
  func.func @transform_2(%arg0: i32) -> (i32, i32) {
    %c0_i32 = arith.constant 0 : i32
    %c0_i32_0 = arith.constant 0 : i32
    %c0_i32_1 = arith.constant 0 : i32
    return %c0_i32, %c0_i32_0 : i32, i32
  }
  func.func @transform_3(%arg0: i32) -> (i32, i32) {
    %c0_i32 = arith.constant 0 : i32
    %c0_i32_0 = arith.constant 0 : i32
    return %arg0, %c0_i32 : i32, i32
  }
  func.func @transform_4(%arg0: i32) -> (i32, i32, i32) {
    %c0_i32 = arith.constant 0 : i32
    %c0_i32_0 = arith.constant 0 : i32
    %c0_i32_1 = arith.constant 0 : i32
    return %arg0, %c0_i32, %c0_i32_0 : i32, i32, i32
  }
}

</mosaic_0001>

<llo_original>
// kernel: tpu_custom_call.1
$region0: #{tpu_custom_call.1}
  #allocation0 [shape = 'u32[]', space=smem, size = 0x4, offset = 0x4, fixed_abs, tag = 'smem constant byte address 0x4 - core index']
  #allocation1 [shape = 'u32[144,128]{1,0:T(1,128)}', space=vmem, size = 0x12000, scoped, tag = 'internal scratch']
  %s0 = inlined_call_operand.vmem [shape: f32[32,4], index: 0, kind: input, shape index: {}]
  %s1 = inlined_call_operand.vmem [shape: f32[4,32], index: 1, kind: input, shape index: {}]
  %s2 = inlined_call_operand.vmem [shape: f32[1,32], index: 2, kind: input, shape index: {}]
  %s3 = inlined_call_operand.hbm [shape: f32[32,32], index: 3, kind: output, shape index: {0}]
  %s4 = inlined_call_operand.hbm [shape: f32[1,2,32], index: 4, kind: output, shape index: {1}]
  %5 = xla_tuple %s3, %s4
  %s6 = sld [smem:[#allocation0]]
  $region30: #{tpu_custom_call.1} parent=0
    _
  %s8 = ssub.s32 1, %s6
  %s9 = scalar_select 0, %s8, %s6
  $region1: #{tpu_custom_call.1} parent=0
    #allocation2 [shape = 'u8[16384]{0}', space=vmem, size = 0x4000, scoped, tag = 'output window, operand 0, single buffered']
    #allocation3 [shape = 's32[1]{0}', space=sflag, size = 0x4, scoped, tag = 'scoped memory for tpu_custom_call.1']
    #allocation4 [shape = 'u8[1024]{0}', space=vmem, size = 0x400, scoped, tag = 'output window, operand 1, single buffered']
    #allocation5 [shape = 's32[1]{0}', space=sflag, size = 0x4, scoped, tag = 'scoped memory for tpu_custom_call.1']
    %10 = vsyncpa [#allocation3], 0
    %11 = vsyncpa [#allocation5], 0
    // Predicated region
    $region2: #{tpu_custom_call.1} parent=1 // pred_check
      _
    $region3: #{tpu_custom_call.1} parent=1 // pred_check_branch
      %13 = sbr.rel (0) target = $region5
    $region4: #{tpu_custom_call.1} parent=1 // pred_region
      _
    $region5: #{tpu_custom_call.1} parent=1 // pred_fallthru
      _
    // Predicated region
    $region6: #{tpu_custom_call.1} parent=1 // pred_check
      _
    $region7: #{tpu_custom_call.1} parent=1 // pred_check_branch
      %15 = sbr.rel (0) target = $region9
    $region8: #{tpu_custom_call.1} parent=1 // pred_region
      _
    $region9: #{tpu_custom_call.1} parent=1 // pred_fallthru
      _
    // Predicated region
    $region10: #{tpu_custom_call.1} parent=1 // pred_check
      _
    $region11: #{tpu_custom_call.1} parent=1 // pred_check_branch
      %17 = sbr.rel (0) target = $region13
    $region12: #{tpu_custom_call.1} parent=1 // pred_region
      _
    $region13: #{tpu_custom_call.1} parent=1 // pred_fallthru
      _
    %v18 = vld [vmem:[%s0] sm:$0xff]
    %v19 = vld [vmem:[%s0 + $0x8] sm:$0xff]
    %v20 = vld [vmem:[%s0 + $0x10] sm:$0xff]
    %v21 = vld [vmem:[%s0 + $0x18] sm:$0xff]
    %v22 = vld [vmem:[%s1] sm:$0xf]
    %v23 = vld [vmem:[%s2] sm:$0x1]
    %v25 = vlaneseq
    %v26 = vshrl.u32 %v25, 7
    %v27 = vsub.s32 0, %v26
    %v28 = vrot.slane %v23, %v27
    %vm30 = vcmask 31744
    %v32 = vsel %vm30, %v18, 0
    %v35 = vsel %vm30, %v19, 0
    %v38 = vsel %vm30, %v20, 0
    %v41 = vsel %vm30, %v21, 0
    %vm43 = vcmask 1043456
    %v45 = vsel %vm43, %v22, 0
    %47 = vmatprep.subr.mxu0 0.0
    %48 = vmatpush1.msra.mxu0 %v45
    %49 = vmatprep.subr.mxu0 0.0
    %50 = vmatpush1.msra.mxu0 0.0
    %51 = vmatprep.subr.mxu0 0.0
    %52 = vmatpush1.msra.mxu0 0.0
    %53 = vmatprep.subr.mxu0 0.0
    %54 = vmatpush1.msra.mxu0 0.0
    %55 = vmatprep.subr.mxu0 0.0
    %56 = vmatpush1.msra.mxu0 0.0
    %57 = vmatprep.subr.mxu0 0.0
    %58 = vmatpush1.msra.mxu0 0.0
    %59 = vmatprep.subr.mxu0 0.0
    %60 = vmatpush1.msra.mxu0 0.0
    %61 = vmatprep.subr.mxu0 0.0
    %62 = vmatpush1.msra.mxu0 0.0
    %63 = vmatprep.subr.mxu0 0.0
    %64 = vmatpush1.msra.mxu0 0.0
    %65 = vmatprep.subr.mxu0 0.0
    %66 = vmatpush1.msra.mxu0 0.0
    %67 = vmatprep.subr.mxu0 0.0
    %68 = vmatpush1.msra.mxu0 0.0
    %69 = vmatprep.subr.mxu0 0.0
    %70 = vmatpush1.msra.mxu0 0.0
    %71 = vmatprep.subr.mxu0 0.0
    %72 = vmatpush1.msra.mxu0 0.0
    %73 = vmatprep.subr.mxu0 0.0
    %74 = vmatpush1.msra.mxu0 0.0
    %75 = vmatprep.subr.mxu0 0.0
    %76 = vmatpush1.msra.mxu0 0.0
    %77 = vmatprep.subr.mxu0 0.0
    %78 = vmatpush1.msra.mxu0 0.0
    %79 = vmatprep.subr.mxu0 0.0
    %80 = vmatpush1.msra.mxu0 0.0
    %81 = vmatprep.subr.mxu0 0.0
    %82 = vmatpush1.msra.mxu0 0.0
    %83 = vmatprep.subr.mxu0 0.0
    %84 = vmatpush1.msra.mxu0 0.0
    %85 = vmatprep.subr.mxu0 0.0
    %86 = vmatpush1.msra.mxu0 0.0
    %87 = vmatprep.subr.mxu0 0.0
    %88 = vmatpush1.msra.mxu0 0.0
    %89 = vmatprep.subr.mxu0 0.0
    %90 = vmatpush1.msra.mxu0 0.0
    %91 = vmatprep.subr.mxu0 0.0
    %92 = vmatpush1.msra.mxu0 0.0
    %93 = vmatprep.subr.mxu0 0.0
    %94 = vmatpush1.msra.mxu0 0.0
    %95 = vmatprep.subr.mxu0 0.0
    %96 = vmatpush1.msra.mxu0 0.0
    %97 = vmatprep.subr.mxu0 0.0
    %98 = vmatpush1.msra.mxu0 0.0
    %99 = vmatprep.subr.mxu0 0.0
    %100 = vmatpush1.msra.mxu0 0.0
    %101 = vmatprep.subr.mxu0 0.0
    %102 = vmatpush1.msra.mxu0 0.0
    %103 = vmatprep.subr.mxu0 0.0
    %104 = vmatpush1.msra.mxu0 0.0
    %105 = vmatprep.subr.mxu0 0.0
    %106 = vmatpush1.msra.mxu0 0.0
    %107 = vmatprep.subr.mxu0 0.0
    %108 = vmatpush1.msra.mxu0 0.0
    %109 = vmatprep.subr.mxu0 0.0
    %110 = vmatpush1.msra.mxu0 0.0
    %111 = vmatprep.mubr.f32.mxu0 0.0
    %112 = vmatmul.mubr.f32.gmra.mrb[0].mxu0 %v32
    %v113 = vpop.f32.mrb[0].mxu0
    %v114 = vadd.f32 %v28, %v113
    %v115 = vpop.f32.mrb[0].mxu0
    %116 = vmatprep.mubr.f32.mxu0 0.0
    %117 = vmatmul.mubr.f32.gmra.mrb[0].mxu0 %v35
    %v118 = vpop.f32.mrb[0].mxu0
    %v119 = vadd.f32 %v28, %v118
    %v120 = vpop.f32.mrb[0].mxu0
    %121 = vmatprep.mubr.f32.mxu0 0.0
    %122 = vmatmul.mubr.f32.gmra.mrb[0].mxu0 %v38
    %v123 = vpop.f32.mrb[0].mxu0
    %v124 = vadd.f32 %v28, %v123
    %v125 = vpop.f32.mrb[0].mxu0
    %126 = vmatprep.mubr.f32.mxu0 0.0
    %127 = vmatmul.mubr.f32.gmra.mrb[0].mxu0 %v41
    %v128 = vpop.f32.mrb[0].mxu0
    %v129 = vadd.f32 %v28, %v128
    %v130 = vpop.f32.mrb[0].mxu0
    %131 = vdwg.mxu0
    %vm132 = vcmask 261120
    %v133 = vsel %vm132, %v114, 0.0
    %v134 = vsel %vm132, %v119, 0.0
    %v135 = vadd.f32 %v133, %v134
    %v136 = vsel %vm132, %v124, 0.0
    %v137 = vadd.f32 %v135, %v136
    %v138 = vsel %vm132, %v129, 0.0
    %v139 = vadd.f32 %v137, %v138
    %v140 = vrot.slane %v139, 4
    %v141 = vadd.f32 %v139, %v140
    %v142 = vrot.slane %v141, 2
    %v143 = vadd.f32 %v141, %v142
    %v144 = vrot.slane %v143, 1
    %v145 = vadd.f32 %v143, %v144
    %vm146 = vcmask 253952
    %147 = vst.msk [vmem:[#allocation4] sm:$0x1] %vm146, %v145
    %v148 = vmul.f32 %v114, %v114
    %v149 = vmul.f32 %v119, %v119
    %v150 = vmul.f32 %v124, %v124
    %v151 = vmul.f32 %v129, %v129
    %v152 = vsel %vm132, %v148, 0.0
    %v153 = vsel %vm132, %v149, 0.0
    %v154 = vadd.f32 %v152, %v153
    %v155 = vsel %vm132, %v150, 0.0
    %v156 = vadd.f32 %v154, %v155
    %v157 = vsel %vm132, %v151, 0.0
    %v158 = vadd.f32 %v156, %v157
    %v159 = vrot.slane %v158, 4
    %v160 = vadd.f32 %v158, %v159
    %v161 = vrot.slane %v160, 2
    %v162 = vadd.f32 %v160, %v161
    %v163 = vrot.slane %v162, 1
    %v164 = vadd.f32 %v162, %v163
    %165 = vst.msk [vmem:[#allocation4 + $0x1] sm:$0x1] %vm146, %v164
    %166 = vst.msk [vmem:[#allocation2] sm:$0xff] %vm132, %v114
    %167 = vst.msk [vmem:[#allocation2 + $0x8] sm:$0xff] %vm132, %v119
    %168 = vst.msk [vmem:[#allocation2 + $0x10] sm:$0xff] %vm132, %v124
    %169 = vst.msk [vmem:[#allocation2 + $0x18] sm:$0xff] %vm132, %v129
    // Predicated region
    $region14: #{tpu_custom_call.1} parent=1 // pred_check
      _
    $region15: #{tpu_custom_call.1} parent=1 // pred_check_branch
      %171 = sbr.rel (0) target = $region17
    $region16: #{tpu_custom_call.1} parent=1 // pred_region
      %s173 = ssub.s32 512, 512
      %174 = vsyncadd [#allocation3], %s173
      %s175 = sshll.u32 [#allocation2], 4
      %s176 = int_to_ptr.vmem [resolvable:$true] %s175
      %181 = dma.vmem_to_hbm [thread:$0]  %s176, 512, %s3, [#allocation3], 128, 128, 8
    $region17: #{tpu_custom_call.1} parent=1 // pred_fallthru
      _
    // Predicated region
    $region18: #{tpu_custom_call.1} parent=1 // pred_check
      _
    $region19: #{tpu_custom_call.1} parent=1 // pred_check_branch
      %183 = sbr.rel (0) target = $region21
    $region20: #{tpu_custom_call.1} parent=1 // pred_region
      %s185 = ssub.s32 32, 32
      %186 = vsyncadd [#allocation5], %s185
      %s188 = sshll.u32 [#allocation4], 4
      %s189 = int_to_ptr.vmem [resolvable:$true] %s188
      %191 = dma.vmem_to_hbm [thread:$0]  %s189, 32, %s4, [#allocation5]
    $region21: #{tpu_custom_call.1} parent=1 // pred_fallthru
      _
    // Predicated region
    $region22: #{tpu_custom_call.1} parent=1 // pred_check
      _
    $region23: #{tpu_custom_call.1} parent=1 // pred_check_branch
      %193 = sbr.rel (0) target = $region25
    $region24: #{tpu_custom_call.1} parent=1 // pred_region
      %194 = dma.done [#allocation3], 512
    $region25: #{tpu_custom_call.1} parent=1 // pred_fallthru
      _
    // Predicated region
    $region26: #{tpu_custom_call.1} parent=1 // pred_check
      _
    $region27: #{tpu_custom_call.1} parent=1 // pred_check_branch
      %196 = sbr.rel (0) target = $region29
    $region28: #{tpu_custom_call.1} parent=1 // pred_region
      %197 = dma.done [#allocation5], 32
    $region29: #{tpu_custom_call.1} parent=1 // pred_fallthru
      _
    %198 = vsyncpa [#allocation3], 1
    %199 = vsyncpa [#allocation5], 1

</llo_original>
